<compile_context>
chip_gen: v5e
topology: v5e:2x2
jax: 0.10.0
libtpu: 0.0.40
codegen_flags: <defaults>
</compile_context>

<pallas_src>
import math

import jax
import jax.numpy as jnp
from jax.experimental import pallas as pl
from jax.experimental.pallas import tpu as pltpu

# ----------------------------- config ---------------------------------------
B, S, H = 2, 8, 32          # batch, seq, hidden  (model.config.hidden_size == H)
FFN = 64                    # MLP inner dim
NUM_LAYERS = 2              # encoder layers
VOCAB = 100
NUM_LABELS = 4              # len(config['id2label'])
BS = B * S

assert H >= BS, "activation/bias packing assumes H >= B*S"

# Weight slab (bf16, W_LANES lanes): per layer, stacked along rows:
#   rows [0,H)        : fused QKV weight, Q at lanes 0..H-1, K at 128.., V at 256..
#   rows [H,2H)       : wo  (lanes 0..H-1)
#   rows [2H,3H)      : w1  (lanes 0..FFN-1)
#   rows [3H,3H+FFN)  : w2  (lanes 0..H-1)
# after all layers:   fc weight (H rows, lanes 0..NUM_LABELS-1)
W_LANES = 384
LAYER_W_ROWS = 3 * H + FFN                      # 160
W_ROWS = NUM_LAYERS * LAYER_W_ROWS + H          # 352

# Vector slab (f32, W_LANES lanes): per layer 8 rows
#   [bqkv(384) | bo | ln1g | ln1b | b1 | b2 | ln2g | ln2b], then fc bias row.
VEC_PER_LAYER = 8
VEC_ROWS = NUM_LAYERS * VEC_PER_LAYER + 1       # 17


# ----------------------------- kernel helpers --------------------------------
def _layernorm(x, g, b, eps=1e-5):
    # One-pass variance (mean-zero residual stream -> no cancellation issue here).
    mu = jnp.mean(x, axis=-1, keepdims=True)
    var = jnp.mean(x * x, axis=-1, keepdims=True) - mu * mu
    return (x - mu) * jax.lax.rsqrt(var + eps) * g + b


def _gelu(x):
    c = math.sqrt(2.0 / math.pi)
    return 0.5 * x * (1.0 + jnp.tanh(c * (x + 0.044715 * x * x * x)))


def _softmax_last(x, approx=True):
    m = jnp.max(x, axis=-1, keepdims=True)
    e = jnp.exp(x - m)
    s = jnp.sum(e, axis=-1, keepdims=True)
    # approx=True -> EUP vrcp (free slot); exact divide for the final class
    # probabilities so they sum to 1 within tight tolerance.
    return e * pl.reciprocal(s, approx=approx)


# ----------------------------- pallas kernel ---------------------------------
def model_kernel(act_ref, w_ref, vec_ref, out_ref):
    bf16 = jnp.bfloat16
    x = act_ref[0:BS, :]                        # (B*S, H) f32, pre-flattened in wrapper
    attn_bias = act_ref[BS:2 * BS, 0:BS]        # (B*S, B*S) f32 block-diag additive mask

    for l in range(NUM_LAYERS):                 # static unroll over encoder layers
        wr = l * LAYER_W_ROWS
        vr = l * VEC_PER_LAYER

        wqkv = w_ref[wr:wr + H, :]                          # (H, 384) bf16, Q@0 K@128 V@256
        wo   = w_ref[wr + H:wr + 2 * H, 0:H]                # (H, H)
        w1   = w_ref[wr + 2 * H:wr + 3 * H, 0:FFN]          # (H, FFN)
        w2   = w_ref[wr + 3 * H:wr + 3 * H + FFN, 0:H]      # (FFN, H)

        bqkv = vec_ref[vr + 0:vr + 1, :]                    # (1, 384) f32 (segment-aligned)
        bo   = vec_ref[vr + 1:vr + 2, 0:H]
        ln1g = vec_ref[vr + 2:vr + 3, 0:H]
        ln1b = vec_ref[vr + 3:vr + 4, 0:H]
        b1   = vec_ref[vr + 4:vr + 5, 0:FFN]
        b2   = vec_ref[vr + 5:vr + 6, 0:H]
        ln2g = vec_ref[vr + 6:vr + 7, 0:H]
        ln2b = vec_ref[vr + 7:vr + 8, 0:H]

        # --- attention (single head, head_dim == H), flattened over batch ---
        # 1/sqrt(H) is folded into the Q segment of wqkv/bqkv at init time.
        qkv = jnp.dot(x.astype(bf16), wqkv,
                      preferred_element_type=jnp.float32) + bqkv       # (B*S, 384)
        q = qkv[:, 0:128]          # lanes >= H are exactly 0 (zero-padded weight/bias)
        k = qkv[:, 128:256]
        v = qkv[:, 256:384]

        scores = jnp.einsum('qd,kd->qk', q.astype(bf16), k.astype(bf16),
                            preferred_element_type=jnp.float32)        # (B*S, B*S)
        attn = _softmax_last(scores + attn_bias)   # cross-batch / padded keys -> exactly 0
        ctx = jnp.dot(attn.astype(bf16), v.astype(bf16),
                      preferred_element_type=jnp.float32)              # (B*S, 128)
        attn_out = jnp.dot(ctx[:, 0:H].astype(bf16), wo,
                           preferred_element_type=jnp.float32) + bo    # (B*S, H)

        x = _layernorm(x + attn_out, ln1g, ln1b)

        # --- MLP ---
        h = _gelu(jnp.dot(x.astype(bf16), w1,
                          preferred_element_type=jnp.float32) + b1)    # (B*S, FFN)
        mlp_out = jnp.dot(h.astype(bf16), w2,
                          preferred_element_type=jnp.float32) + b2
        x = _layernorm(x + mlp_out, ln2g, ln2b)

    # nn.Dropout in eval mode is identity.
    fc_r = NUM_LAYERS * LAYER_W_ROWS
    fcw = w_ref[fc_r:fc_r + H, 0:NUM_LABELS]                           # (H, NUM_LABELS) bf16
    fcb = vec_ref[NUM_LAYERS * VEC_PER_LAYER:NUM_LAYERS * VEC_PER_LAYER + 1, 0:NUM_LABELS]
    logits = jnp.dot(x.astype(jnp.bfloat16), fcw,
                     preferred_element_type=jnp.float32) + fcb         # (B*S, NUM_LABELS)
    probs = _softmax_last(logits, approx=False)       # exact torch.softmax(., dim=1)
    for b in range(B):                                # CLS rows 0 and S (8-aligned reads)
        out_ref[b:b + 1, :] = probs[b * S:b * S + 1, :]


# ----------------------------- wrapper ---------------------------------------
def hf_custom_model_forward(input_ids, attention_mask, params):
    # Glue: embedding gather + position embeddings (data-dependent gather kept in JAX).
    # TODO(synk): embedding lookup could be moved into a manual-DMA gather kernel.
    x = (params['tok_emb'][input_ids] + params['pos_emb'][None, :, :]).reshape(BS, H)

    # Block-diagonal additive attention bias: 0 where (same batch & key valid), else -1e9.
    key_valid = attention_mask.astype(jnp.float32).reshape(BS)
    batch_id = jnp.repeat(jnp.arange(B, dtype=jnp.int32), S)
    same_batch = (batch_id[:, None] == batch_id[None, :]).astype(jnp.float32)
    bias = (same_batch * key_valid[None, :] - 1.0) * 1e9               # (B*S, B*S)

    # Pack activations + bias into one operand: rows [0,BS) = x, rows [BS,2BS) = bias.
    bias_pad = jnp.pad(bias, ((0, 0), (0, H - BS)))
    act = jnp.concatenate([x, bias_pad], axis=0)                       # (2*B*S, H)

    vmem = pl.BlockSpec(memory_space=pltpu.MemorySpace.VMEM)           # full arrays in VMEM
    return pl.pallas_call(
        model_kernel,
        out_shape=jax.ShapeDtypeStruct((B, NUM_LABELS), jnp.float32),
        in_specs=[vmem, vmem, vmem],
        out_specs=vmem,
    )(act, params['w'], params['vec'])


# ----------------------------- params ----------------------------------------
def init_params(key):
    ks = jax.random.split(key, 10)

    def init(k, shape, scale=0.02):
        return (scale * jax.random.normal(k, shape)).astype(jnp.float32)

    L = NUM_LAYERS
    attn_scale = 1.0 / math.sqrt(H)      # single-head attention, head_dim == H

    # Raw per-layer parameters (same structure as a post-LN encoder block).
    wq = init(ks[2], (L, H, H)) * attn_scale   # 1/sqrt(H) folded into Q projection
    wk = init(ks[3], (L, H, H))
    wv = init(ks[4], (L, H, H))
    wo = init(ks[5], (L, H, H))
    w1 = init(ks[6], (L, H, FFN))
    w2 = init(ks[7], (L, FFN, H))
    fcw = init(ks[8], (H, NUM_LABELS))
    fcb = jnp.zeros((1, NUM_LABELS), jnp.float32)

    zH   = jnp.zeros((L, 1, H), jnp.float32)
    oH   = jnp.ones((L, 1, H), jnp.float32)
    zFFN = jnp.zeros((L, 1, FFN), jnp.float32)
    bq = zH * attn_scale                       # scale folded into Q bias too
    bk, bv, bo_, b2 = zH, zH, zH, zH
    ln1g, ln1b, ln2g, ln2b = oH, zH, oH, zH
    b1 = zFFN

    def padl(a, width=W_LANES):                # zero-pad last dim to `width` lanes
        return jnp.pad(a, ((0, 0), (0, width - a.shape[-1])))

    # --- pack into two slabs: bf16 weights (aligned segments) + f32 vectors ---
    w_rows, vec_rows = [], []
    for l in range(L):
        qkv384 = jnp.concatenate([padl(wq[l], 128), padl(wk[l], 128), padl(wv[l], 128)], axis=1)
        w_rows += [qkv384, padl(wo[l]), padl(w1[l]), padl(w2[l])]
        bqkv384 = jnp.concatenate([padl(bq[l], 128), padl(bk[l], 128), padl(bv[l], 128)], axis=1)
        vec_rows += [bqkv384, padl(bo_[l]), padl(ln1g[l]), padl(ln1b[l]),
                     padl(b1[l]), padl(b2[l]), padl(ln2g[l]), padl(ln2b[l])]
    w_rows.append(padl(fcw))
    vec_rows.append(padl(fcb))

    w_slab = jnp.concatenate(w_rows, axis=0).astype(jnp.bfloat16)      # (W_ROWS, 384)
    vec_slab = jnp.concatenate(vec_rows, axis=0)                       # (VEC_ROWS, 384) f32
    assert w_slab.shape == (W_ROWS, W_LANES)
    assert vec_slab.shape == (VEC_ROWS, W_LANES)

    return {
        'tok_emb': init(ks[0], (VOCAB, H)),
        'pos_emb': init(ks[1], (S, H)),
        'w': w_slab, 'vec': vec_slab,
    }


# ----------------------------- main -------------------------------------------
if __name__ == "__main__":
    key = jax.random.PRNGKey(0)
    pkey, ikey = jax.random.split(key)
    params = init_params(pkey)

    input_ids = jax.random.randint(ikey, (B, S), 0, VOCAB, dtype=jnp.int32)
    attention_mask = jnp.ones((B, S), dtype=jnp.int32).at[:, 6:].set(0)  # last 2 tokens padded

    probs = hf_custom_model_forward(input_ids, attention_mask, params)
    probs = jax.block_until_ready(probs)

    assert probs.shape == (B, NUM_LABELS)
    assert bool(jnp.all(jnp.isfinite(probs)))
    assert bool(jnp.allclose(jnp.sum(probs, axis=-1), 1.0, atol=1e-5))
    print("KERNEL_OK")
</pallas_src>

<mosaic_0001>
module attributes {stable_mosaic.version = 11 : i64} {
  func.func @model_kernel(%arg0: memref<32x32xf32, #tpu.memory_space<vmem>>, %arg1: memref<352x384xbf16, #tpu.memory_space<vmem>>, %arg2: memref<17x384xf32, #tpu.memory_space<vmem>>, %arg3: memref<2x4xf32, #tpu.memory_space<vmem>>) attributes {dimension_semantics = [], scalar_prefetch = 0 : i64, scratch_operands = 0 : i64, tpu.core_type = #tpu.core_type<tc>} {
    %c0 = arith.constant 0 : index
    %c0_0 = arith.constant 0 : index
    %0 = vector.load %arg0[%c0, %c0_0] : memref<32x32xf32, #tpu.memory_space<vmem>>, vector<16x32xf32>
    %c16 = arith.constant 16 : index
    %c0_1 = arith.constant 0 : index
    %1 = vector.load %arg0[%c16, %c0_1] : memref<32x32xf32, #tpu.memory_space<vmem>>, vector<16x16xf32>
    %c0_2 = arith.constant 0 : index
    %c0_3 = arith.constant 0 : index
    %2 = vector.load %arg1[%c0_2, %c0_3] : memref<352x384xbf16, #tpu.memory_space<vmem>>, vector<32x384xbf16>
    %c32 = arith.constant 32 : index
    %c0_4 = arith.constant 0 : index
    %3 = vector.load %arg1[%c32, %c0_4] : memref<352x384xbf16, #tpu.memory_space<vmem>>, vector<32x32xbf16>
    %c64 = arith.constant 64 : index
    %c0_5 = arith.constant 0 : index
    %4 = vector.load %arg1[%c64, %c0_5] : memref<352x384xbf16, #tpu.memory_space<vmem>>, vector<32x64xbf16>
    %c96 = arith.constant 96 : index
    %c0_6 = arith.constant 0 : index
    %5 = vector.load %arg1[%c96, %c0_6] : memref<352x384xbf16, #tpu.memory_space<vmem>>, vector<64x32xbf16>
    %c0_7 = arith.constant 0 : index
    %c0_8 = arith.constant 0 : index
    %6 = vector.load %arg2[%c0_7, %c0_8] : memref<17x384xf32, #tpu.memory_space<vmem>>, vector<1x384xf32>
    %c1 = arith.constant 1 : index
    %c0_9 = arith.constant 0 : index
    %7 = vector.load %arg2[%c1, %c0_9] : memref<17x384xf32, #tpu.memory_space<vmem>>, vector<1x32xf32>
    %c2 = arith.constant 2 : index
    %c0_10 = arith.constant 0 : index
    %8 = vector.load %arg2[%c2, %c0_10] : memref<17x384xf32, #tpu.memory_space<vmem>>, vector<1x32xf32>
    %c3 = arith.constant 3 : index
    %c0_11 = arith.constant 0 : index
    %9 = vector.load %arg2[%c3, %c0_11] : memref<17x384xf32, #tpu.memory_space<vmem>>, vector<1x32xf32>
    %c4 = arith.constant 4 : index
    %c0_12 = arith.constant 0 : index
    %10 = vector.load %arg2[%c4, %c0_12] : memref<17x384xf32, #tpu.memory_space<vmem>>, vector<1x64xf32>
    %c5 = arith.constant 5 : index
    %c0_13 = arith.constant 0 : index
    %11 = vector.load %arg2[%c5, %c0_13] : memref<17x384xf32, #tpu.memory_space<vmem>>, vector<1x32xf32>
    %c6 = arith.constant 6 : index
    %c0_14 = arith.constant 0 : index
    %12 = vector.load %arg2[%c6, %c0_14] : memref<17x384xf32, #tpu.memory_space<vmem>>, vector<1x32xf32>
    %c7 = arith.constant 7 : index
    %c0_15 = arith.constant 0 : index
    %13 = vector.load %arg2[%c7, %c0_15] : memref<17x384xf32, #tpu.memory_space<vmem>>, vector<1x32xf32>
    %14 = arith.truncf %0 : vector<16x32xf32> to vector<16x32xbf16>
    %cst = arith.constant dense<0.000000e+00> : vector<16x384xf32>
    %15 = tpu.matmul %14, %2, %cst {dimension_numbers = #tpu.dot_dimension_numbers<[1], [0], [0], [1], [0, 0, 1, 1], [], []>} : vector<16x32xbf16>, vector<32x384xbf16>, vector<16x384xf32> -> vector<16x384xf32>
    %16 = vector.broadcast %6 : vector<1x384xf32> to vector<16x384xf32>
    %17 = arith.addf %15, %16 : vector<16x384xf32>
    %18 = vector.extract_strided_slice %17 {offsets = [0, 0], sizes = [16, 128], strides = [1, 1]} : vector<16x384xf32> to vector<16x128xf32>
    %19 = vector.extract_strided_slice %17 {offsets = [0, 128], sizes = [16, 128], strides = [1, 1]} : vector<16x384xf32> to vector<16x128xf32>
    %20 = vector.extract_strided_slice %17 {offsets = [0, 256], sizes = [16, 128], strides = [1, 1]} : vector<16x384xf32> to vector<16x128xf32>
    %21 = arith.truncf %18 : vector<16x128xf32> to vector<16x128xbf16>
    %22 = arith.truncf %19 : vector<16x128xf32> to vector<16x128xbf16>
    "tpu.trace_start"() <{level = 10 : i32, message = "qd,kd->qk"}> : () -> ()
    %cst_16 = arith.constant dense<0.000000e+00> : vector<16x16xf32>
    %23 = tpu.matmul %21, %22, %cst_16 {dimension_numbers = #tpu.dot_dimension_numbers<[1], [1], [0], [0], [0, 0, 1, 0], [], []>} : vector<16x128xbf16>, vector<16x128xbf16>, vector<16x16xf32> -> vector<16x16xf32>
    "tpu.trace_stop"() : () -> ()
    %24 = arith.addf %23, %1 : vector<16x16xf32>
    %cst_17 = arith.constant dense<0xFF800000> : vector<16xf32>
    %25 = vector.multi_reduction <maximumf>, %24, %cst_17 [1] : vector<16x16xf32> to vector<16xf32>
    %26 = vector.shape_cast %25 : vector<16xf32> to vector<16x1xf32>
    %27 = vector.broadcast %26 : vector<16x1xf32> to vector<16x16xf32>
    %28 = arith.subf %24, %27 : vector<16x16xf32>
    %29 = math.exp %28 : vector<16x16xf32>
    %cst_18 = arith.constant dense<0.000000e+00> : vector<16xf32>
    %30 = vector.multi_reduction <add>, %29, %cst_18 [1] : vector<16x16xf32> to vector<16xf32>
    %31 = vector.shape_cast %30 : vector<16xf32> to vector<16x1xf32>
    %32 = tpu.reciprocal %31 {approx = true} : vector<16x1xf32> -> vector<16x1xf32>
    %33 = vector.broadcast %32 : vector<16x1xf32> to vector<16x16xf32>
    %34 = arith.mulf %29, %33 : vector<16x16xf32>
    %35 = arith.truncf %34 : vector<16x16xf32> to vector<16x16xbf16>
    %36 = arith.truncf %20 : vector<16x128xf32> to vector<16x128xbf16>
    %cst_19 = arith.constant dense<0.000000e+00> : vector<16x128xf32>
    %37 = tpu.matmul %35, %36, %cst_19 {dimension_numbers = #tpu.dot_dimension_numbers<[1], [0], [0], [1], [0, 0, 1, 1], [], []>} : vector<16x16xbf16>, vector<16x128xbf16>, vector<16x128xf32> -> vector<16x128xf32>
    %38 = vector.extract_strided_slice %37 {offsets = [0, 0], sizes = [16, 32], strides = [1, 1]} : vector<16x128xf32> to vector<16x32xf32>
    %39 = arith.truncf %38 : vector<16x32xf32> to vector<16x32xbf16>
    %cst_20 = arith.constant dense<0.000000e+00> : vector<16x32xf32>
    %40 = tpu.matmul %39, %3, %cst_20 {dimension_numbers = #tpu.dot_dimension_numbers<[1], [0], [0], [1], [0, 0, 1, 1], [], []>} : vector<16x32xbf16>, vector<32x32xbf16>, vector<16x32xf32> -> vector<16x32xf32>
    %41 = vector.broadcast %7 : vector<1x32xf32> to vector<16x32xf32>
    %42 = arith.addf %40, %41 : vector<16x32xf32>
    %43 = arith.addf %0, %42 : vector<16x32xf32>
    %cst_21 = arith.constant dense<0.000000e+00> : vector<16xf32>
    %44 = vector.multi_reduction <add>, %43, %cst_21 [1] : vector<16x32xf32> to vector<16xf32>
    %45 = vector.shape_cast %44 : vector<16xf32> to vector<16x1xf32>
    %cst_22 = arith.constant 3.200000e+01 : f32
    %46 = vector.broadcast %cst_22 : f32 to vector<16x1xf32>
    %47 = arith.divf %45, %46 : vector<16x1xf32>
    %48 = arith.mulf %43, %43 : vector<16x32xf32>
    %cst_23 = arith.constant dense<0.000000e+00> : vector<16xf32>
    %49 = vector.multi_reduction <add>, %48, %cst_23 [1] : vector<16x32xf32> to vector<16xf32>
    %50 = vector.shape_cast %49 : vector<16xf32> to vector<16x1xf32>
    %cst_24 = arith.constant 3.200000e+01 : f32
    %51 = vector.broadcast %cst_24 : f32 to vector<16x1xf32>
    %52 = arith.divf %50, %51 : vector<16x1xf32>
    %53 = arith.mulf %47, %47 : vector<16x1xf32>
    %54 = arith.subf %52, %53 : vector<16x1xf32>
    %55 = vector.broadcast %47 : vector<16x1xf32> to vector<16x32xf32>
    %56 = arith.subf %43, %55 : vector<16x32xf32>
    %cst_25 = arith.constant 9.99999974E-6 : f32
    %57 = vector.broadcast %cst_25 : f32 to vector<16x1xf32>
    %58 = arith.addf %54, %57 : vector<16x1xf32>
    %59 = math.rsqrt %58 : vector<16x1xf32>
    %60 = vector.broadcast %59 : vector<16x1xf32> to vector<16x32xf32>
    %61 = arith.mulf %56, %60 : vector<16x32xf32>
    %62 = vector.broadcast %8 : vector<1x32xf32> to vector<16x32xf32>
    %63 = arith.mulf %61, %62 : vector<16x32xf32>
    %64 = vector.broadcast %9 : vector<1x32xf32> to vector<16x32xf32>
    %65 = arith.addf %63, %64 : vector<16x32xf32>
    %66 = arith.truncf %65 : vector<16x32xf32> to vector<16x32xbf16>
    %cst_26 = arith.constant dense<0.000000e+00> : vector<16x64xf32>
    %67 = tpu.matmul %66, %4, %cst_26 {dimension_numbers = #tpu.dot_dimension_numbers<[1], [0], [0], [1], [0, 0, 1, 1], [], []>} : vector<16x32xbf16>, vector<32x64xbf16>, vector<16x64xf32> -> vector<16x64xf32>
    %68 = vector.broadcast %10 : vector<1x64xf32> to vector<16x64xf32>
    %69 = arith.addf %67, %68 : vector<16x64xf32>
    %cst_27 = arith.constant 5.000000e-01 : f32
    %70 = vector.broadcast %cst_27 : f32 to vector<16x64xf32>
    %71 = arith.mulf %70, %69 : vector<16x64xf32>
    %cst_28 = arith.constant 4.471500e-02 : f32
    %72 = vector.broadcast %cst_28 : f32 to vector<16x64xf32>
    %73 = arith.mulf %72, %69 : vector<16x64xf32>
    %74 = arith.mulf %73, %69 : vector<16x64xf32>
    %75 = arith.mulf %74, %69 : vector<16x64xf32>
    %76 = arith.addf %69, %75 : vector<16x64xf32>
    %cst_29 = arith.constant 0.797884583 : f32
    %77 = vector.broadcast %cst_29 : f32 to vector<16x64xf32>
    %78 = arith.mulf %77, %76 : vector<16x64xf32>
    %79 = math.tanh %78 : vector<16x64xf32>
    %cst_30 = arith.constant 1.000000e+00 : f32
    %80 = vector.broadcast %cst_30 : f32 to vector<16x64xf32>
    %81 = arith.addf %80, %79 : vector<16x64xf32>
    %82 = arith.mulf %71, %81 : vector<16x64xf32>
    %83 = arith.truncf %82 : vector<16x64xf32> to vector<16x64xbf16>
    %cst_31 = arith.constant dense<0.000000e+00> : vector<16x32xf32>
    %84 = tpu.matmul %83, %5, %cst_31 {dimension_numbers = #tpu.dot_dimension_numbers<[1], [0], [0], [1], [0, 0, 1, 1], [], []>} : vector<16x64xbf16>, vector<64x32xbf16>, vector<16x32xf32> -> vector<16x32xf32>
    %85 = vector.broadcast %11 : vector<1x32xf32> to vector<16x32xf32>
    %86 = arith.addf %84, %85 : vector<16x32xf32>
    %87 = arith.addf %65, %86 : vector<16x32xf32>
    %cst_32 = arith.constant dense<0.000000e+00> : vector<16xf32>
    %88 = vector.multi_reduction <add>, %87, %cst_32 [1] : vector<16x32xf32> to vector<16xf32>
    %89 = vector.shape_cast %88 : vector<16xf32> to vector<16x1xf32>
    %cst_33 = arith.constant 3.200000e+01 : f32
    %90 = vector.broadcast %cst_33 : f32 to vector<16x1xf32>
    %91 = arith.divf %89, %90 : vector<16x1xf32>
    %92 = arith.mulf %87, %87 : vector<16x32xf32>
    %cst_34 = arith.constant dense<0.000000e+00> : vector<16xf32>
    %93 = vector.multi_reduction <add>, %92, %cst_34 [1] : vector<16x32xf32> to vector<16xf32>
    %94 = vector.shape_cast %93 : vector<16xf32> to vector<16x1xf32>
    %cst_35 = arith.constant 3.200000e+01 : f32
    %95 = vector.broadcast %cst_35 : f32 to vector<16x1xf32>
    %96 = arith.divf %94, %95 : vector<16x1xf32>
    %97 = arith.mulf %91, %91 : vector<16x1xf32>
    %98 = arith.subf %96, %97 : vector<16x1xf32>
    %99 = vector.broadcast %91 : vector<16x1xf32> to vector<16x32xf32>
    %100 = arith.subf %87, %99 : vector<16x32xf32>
    %cst_36 = arith.constant 9.99999974E-6 : f32
    %101 = vector.broadcast %cst_36 : f32 to vector<16x1xf32>
    %102 = arith.addf %98, %101 : vector<16x1xf32>
    %103 = math.rsqrt %102 : vector<16x1xf32>
    %104 = vector.broadcast %103 : vector<16x1xf32> to vector<16x32xf32>
    %105 = arith.mulf %100, %104 : vector<16x32xf32>
    %106 = vector.broadcast %12 : vector<1x32xf32> to vector<16x32xf32>
    %107 = arith.mulf %105, %106 : vector<16x32xf32>
    %108 = vector.broadcast %13 : vector<1x32xf32> to vector<16x32xf32>
    %109 = arith.addf %107, %108 : vector<16x32xf32>
    %c160 = arith.constant 160 : index
    %c0_37 = arith.constant 0 : index
    %110 = vector.load %arg1[%c160, %c0_37] : memref<352x384xbf16, #tpu.memory_space<vmem>>, vector<32x384xbf16>
    %c192 = arith.constant 192 : index
    %c0_38 = arith.constant 0 : index
    %111 = vector.load %arg1[%c192, %c0_38] : memref<352x384xbf16, #tpu.memory_space<vmem>>, vector<32x32xbf16>
    %c224 = arith.constant 224 : index
    %c0_39 = arith.constant 0 : index
    %112 = vector.load %arg1[%c224, %c0_39] : memref<352x384xbf16, #tpu.memory_space<vmem>>, vector<32x64xbf16>
    %c256 = arith.constant 256 : index
    %c0_40 = arith.constant 0 : index
    %113 = vector.load %arg1[%c256, %c0_40] : memref<352x384xbf16, #tpu.memory_space<vmem>>, vector<64x32xbf16>
    %c8 = arith.constant 8 : index
    %c0_41 = arith.constant 0 : index
    %114 = vector.load %arg2[%c8, %c0_41] : memref<17x384xf32, #tpu.memory_space<vmem>>, vector<1x384xf32>
    %c9 = arith.constant 9 : index
    %c0_42 = arith.constant 0 : index
    %115 = vector.load %arg2[%c9, %c0_42] : memref<17x384xf32, #tpu.memory_space<vmem>>, vector<1x32xf32>
    %c10 = arith.constant 10 : index
    %c0_43 = arith.constant 0 : index
    %116 = vector.load %arg2[%c10, %c0_43] : memref<17x384xf32, #tpu.memory_space<vmem>>, vector<1x32xf32>
    %c11 = arith.constant 11 : index
    %c0_44 = arith.constant 0 : index
    %117 = vector.load %arg2[%c11, %c0_44] : memref<17x384xf32, #tpu.memory_space<vmem>>, vector<1x32xf32>
    %c12 = arith.constant 12 : index
    %c0_45 = arith.constant 0 : index
    %118 = vector.load %arg2[%c12, %c0_45] : memref<17x384xf32, #tpu.memory_space<vmem>>, vector<1x64xf32>
    %c13 = arith.constant 13 : index
    %c0_46 = arith.constant 0 : index
    %119 = vector.load %arg2[%c13, %c0_46] : memref<17x384xf32, #tpu.memory_space<vmem>>, vector<1x32xf32>
    %c14 = arith.constant 14 : index
    %c0_47 = arith.constant 0 : index
    %120 = vector.load %arg2[%c14, %c0_47] : memref<17x384xf32, #tpu.memory_space<vmem>>, vector<1x32xf32>
    %c15 = arith.constant 15 : index
    %c0_48 = arith.constant 0 : index
    %121 = vector.load %arg2[%c15, %c0_48] : memref<17x384xf32, #tpu.memory_space<vmem>>, vector<1x32xf32>
    %122 = arith.truncf %109 : vector<16x32xf32> to vector<16x32xbf16>
    %cst_49 = arith.constant dense<0.000000e+00> : vector<16x384xf32>
    %123 = tpu.matmul %122, %110, %cst_49 {dimension_numbers = #tpu.dot_dimension_numbers<[1], [0], [0], [1], [0, 0, 1, 1], [], []>} : vector<16x32xbf16>, vector<32x384xbf16>, vector<16x384xf32> -> vector<16x384xf32>
    %124 = vector.broadcast %114 : vector<1x384xf32> to vector<16x384xf32>
    %125 = arith.addf %123, %124 : vector<16x384xf32>
    %126 = vector.extract_strided_slice %125 {offsets = [0, 0], sizes = [16, 128], strides = [1, 1]} : vector<16x384xf32> to vector<16x128xf32>
    %127 = vector.extract_strided_slice %125 {offsets = [0, 128], sizes = [16, 128], strides = [1, 1]} : vector<16x384xf32> to vector<16x128xf32>
    %128 = vector.extract_strided_slice %125 {offsets = [0, 256], sizes = [16, 128], strides = [1, 1]} : vector<16x384xf32> to vector<16x128xf32>
    %129 = arith.truncf %126 : vector<16x128xf32> to vector<16x128xbf16>
    %130 = arith.truncf %127 : vector<16x128xf32> to vector<16x128xbf16>
    "tpu.trace_start"() <{level = 10 : i32, message = "qd,kd->qk"}> : () -> ()
    %cst_50 = arith.constant dense<0.000000e+00> : vector<16x16xf32>
    %131 = tpu.matmul %129, %130, %cst_50 {dimension_numbers = #tpu.dot_dimension_numbers<[1], [1], [0], [0], [0, 0, 1, 0], [], []>} : vector<16x128xbf16>, vector<16x128xbf16>, vector<16x16xf32> -> vector<16x16xf32>
    "tpu.trace_stop"() : () -> ()
    %132 = arith.addf %131, %1 : vector<16x16xf32>
    %cst_51 = arith.constant dense<0xFF800000> : vector<16xf32>
    %133 = vector.multi_reduction <maximumf>, %132, %cst_51 [1] : vector<16x16xf32> to vector<16xf32>
    %134 = vector.shape_cast %133 : vector<16xf32> to vector<16x1xf32>
    %135 = vector.broadcast %134 : vector<16x1xf32> to vector<16x16xf32>
    %136 = arith.subf %132, %135 : vector<16x16xf32>
    %137 = math.exp %136 : vector<16x16xf32>
    %cst_52 = arith.constant dense<0.000000e+00> : vector<16xf32>
    %138 = vector.multi_reduction <add>, %137, %cst_52 [1] : vector<16x16xf32> to vector<16xf32>
    %139 = vector.shape_cast %138 : vector<16xf32> to vector<16x1xf32>
    %140 = tpu.reciprocal %139 {approx = true} : vector<16x1xf32> -> vector<16x1xf32>
    %141 = vector.broadcast %140 : vector<16x1xf32> to vector<16x16xf32>
    %142 = arith.mulf %137, %141 : vector<16x16xf32>
    %143 = arith.truncf %142 : vector<16x16xf32> to vector<16x16xbf16>
    %144 = arith.truncf %128 : vector<16x128xf32> to vector<16x128xbf16>
    %cst_53 = arith.constant dense<0.000000e+00> : vector<16x128xf32>
    %145 = tpu.matmul %143, %144, %cst_53 {dimension_numbers = #tpu.dot_dimension_numbers<[1], [0], [0], [1], [0, 0, 1, 1], [], []>} : vector<16x16xbf16>, vector<16x128xbf16>, vector<16x128xf32> -> vector<16x128xf32>
    %146 = vector.extract_strided_slice %145 {offsets = [0, 0], sizes = [16, 32], strides = [1, 1]} : vector<16x128xf32> to vector<16x32xf32>
    %147 = arith.truncf %146 : vector<16x32xf32> to vector<16x32xbf16>
    %cst_54 = arith.constant dense<0.000000e+00> : vector<16x32xf32>
    %148 = tpu.matmul %147, %111, %cst_54 {dimension_numbers = #tpu.dot_dimension_numbers<[1], [0], [0], [1], [0, 0, 1, 1], [], []>} : vector<16x32xbf16>, vector<32x32xbf16>, vector<16x32xf32> -> vector<16x32xf32>
    %149 = vector.broadcast %115 : vector<1x32xf32> to vector<16x32xf32>
    %150 = arith.addf %148, %149 : vector<16x32xf32>
    %151 = arith.addf %109, %150 : vector<16x32xf32>
    %cst_55 = arith.constant dense<0.000000e+00> : vector<16xf32>
    %152 = vector.multi_reduction <add>, %151, %cst_55 [1] : vector<16x32xf32> to vector<16xf32>
    %153 = vector.shape_cast %152 : vector<16xf32> to vector<16x1xf32>
    %cst_56 = arith.constant 3.200000e+01 : f32
    %154 = vector.broadcast %cst_56 : f32 to vector<16x1xf32>
    %155 = arith.divf %153, %154 : vector<16x1xf32>
    %156 = arith.mulf %151, %151 : vector<16x32xf32>
    %cst_57 = arith.constant dense<0.000000e+00> : vector<16xf32>
    %157 = vector.multi_reduction <add>, %156, %cst_57 [1] : vector<16x32xf32> to vector<16xf32>
    %158 = vector.shape_cast %157 : vector<16xf32> to vector<16x1xf32>
    %cst_58 = arith.constant 3.200000e+01 : f32
    %159 = vector.broadcast %cst_58 : f32 to vector<16x1xf32>
    %160 = arith.divf %158, %159 : vector<16x1xf32>
    %161 = arith.mulf %155, %155 : vector<16x1xf32>
    %162 = arith.subf %160, %161 : vector<16x1xf32>
    %163 = vector.broadcast %155 : vector<16x1xf32> to vector<16x32xf32>
    %164 = arith.subf %151, %163 : vector<16x32xf32>
    %cst_59 = arith.constant 9.99999974E-6 : f32
    %165 = vector.broadcast %cst_59 : f32 to vector<16x1xf32>
    %166 = arith.addf %162, %165 : vector<16x1xf32>
    %167 = math.rsqrt %166 : vector<16x1xf32>
    %168 = vector.broadcast %167 : vector<16x1xf32> to vector<16x32xf32>
    %169 = arith.mulf %164, %168 : vector<16x32xf32>
    %170 = vector.broadcast %116 : vector<1x32xf32> to vector<16x32xf32>
    %171 = arith.mulf %169, %170 : vector<16x32xf32>
    %172 = vector.broadcast %117 : vector<1x32xf32> to vector<16x32xf32>
    %173 = arith.addf %171, %172 : vector<16x32xf32>
    %174 = arith.truncf %173 : vector<16x32xf32> to vector<16x32xbf16>
    %cst_60 = arith.constant dense<0.000000e+00> : vector<16x64xf32>
    %175 = tpu.matmul %174, %112, %cst_60 {dimension_numbers = #tpu.dot_dimension_numbers<[1], [0], [0], [1], [0, 0, 1, 1], [], []>} : vector<16x32xbf16>, vector<32x64xbf16>, vector<16x64xf32> -> vector<16x64xf32>
    %176 = vector.broadcast %118 : vector<1x64xf32> to vector<16x64xf32>
    %177 = arith.addf %175, %176 : vector<16x64xf32>
    %cst_61 = arith.constant 5.000000e-01 : f32
    %178 = vector.broadcast %cst_61 : f32 to vector<16x64xf32>
    %179 = arith.mulf %178, %177 : vector<16x64xf32>
    %cst_62 = arith.constant 4.471500e-02 : f32
    %180 = vector.broadcast %cst_62 : f32 to vector<16x64xf32>
    %181 = arith.mulf %180, %177 : vector<16x64xf32>
    %182 = arith.mulf %181, %177 : vector<16x64xf32>
    %183 = arith.mulf %182, %177 : vector<16x64xf32>
    %184 = arith.addf %177, %183 : vector<16x64xf32>
    %cst_63 = arith.constant 0.797884583 : f32
    %185 = vector.broadcast %cst_63 : f32 to vector<16x64xf32>
    %186 = arith.mulf %185, %184 : vector<16x64xf32>
    %187 = math.tanh %186 : vector<16x64xf32>
    %cst_64 = arith.constant 1.000000e+00 : f32
    %188 = vector.broadcast %cst_64 : f32 to vector<16x64xf32>
    %189 = arith.addf %188, %187 : vector<16x64xf32>
    %190 = arith.mulf %179, %189 : vector<16x64xf32>
    %191 = arith.truncf %190 : vector<16x64xf32> to vector<16x64xbf16>
    %cst_65 = arith.constant dense<0.000000e+00> : vector<16x32xf32>
    %192 = tpu.matmul %191, %113, %cst_65 {dimension_numbers = #tpu.dot_dimension_numbers<[1], [0], [0], [1], [0, 0, 1, 1], [], []>} : vector<16x64xbf16>, vector<64x32xbf16>, vector<16x32xf32> -> vector<16x32xf32>
    %193 = vector.broadcast %119 : vector<1x32xf32> to vector<16x32xf32>
    %194 = arith.addf %192, %193 : vector<16x32xf32>
    %195 = arith.addf %173, %194 : vector<16x32xf32>
    %cst_66 = arith.constant dense<0.000000e+00> : vector<16xf32>
    %196 = vector.multi_reduction <add>, %195, %cst_66 [1] : vector<16x32xf32> to vector<16xf32>
    %197 = vector.shape_cast %196 : vector<16xf32> to vector<16x1xf32>
    %cst_67 = arith.constant 3.200000e+01 : f32
    %198 = vector.broadcast %cst_67 : f32 to vector<16x1xf32>
    %199 = arith.divf %197, %198 : vector<16x1xf32>
    %200 = arith.mulf %195, %195 : vector<16x32xf32>
    %cst_68 = arith.constant dense<0.000000e+00> : vector<16xf32>
    %201 = vector.multi_reduction <add>, %200, %cst_68 [1] : vector<16x32xf32> to vector<16xf32>
    %202 = vector.shape_cast %201 : vector<16xf32> to vector<16x1xf32>
    %cst_69 = arith.constant 3.200000e+01 : f32
    %203 = vector.broadcast %cst_69 : f32 to vector<16x1xf32>
    %204 = arith.divf %202, %203 : vector<16x1xf32>
    %205 = arith.mulf %199, %199 : vector<16x1xf32>
    %206 = arith.subf %204, %205 : vector<16x1xf32>
    %207 = vector.broadcast %199 : vector<16x1xf32> to vector<16x32xf32>
    %208 = arith.subf %195, %207 : vector<16x32xf32>
    %cst_70 = arith.constant 9.99999974E-6 : f32
    %209 = vector.broadcast %cst_70 : f32 to vector<16x1xf32>
    %210 = arith.addf %206, %209 : vector<16x1xf32>
    %211 = math.rsqrt %210 : vector<16x1xf32>
    %212 = vector.broadcast %211 : vector<16x1xf32> to vector<16x32xf32>
    %213 = arith.mulf %208, %212 : vector<16x32xf32>
    %214 = vector.broadcast %120 : vector<1x32xf32> to vector<16x32xf32>
    %215 = arith.mulf %213, %214 : vector<16x32xf32>
    %216 = vector.broadcast %121 : vector<1x32xf32> to vector<16x32xf32>
    %217 = arith.addf %215, %216 : vector<16x32xf32>
    %c320 = arith.constant 320 : index
    %c0_71 = arith.constant 0 : index
    %218 = vector.load %arg1[%c320, %c0_71] : memref<352x384xbf16, #tpu.memory_space<vmem>>, vector<32x4xbf16>
    %c16_72 = arith.constant 16 : index
    %c0_73 = arith.constant 0 : index
    %219 = vector.load %arg2[%c16_72, %c0_73] : memref<17x384xf32, #tpu.memory_space<vmem>>, vector<1x4xf32>
    %220 = arith.truncf %217 : vector<16x32xf32> to vector<16x32xbf16>
    %cst_74 = arith.constant dense<0.000000e+00> : vector<16x4xf32>
    %221 = tpu.matmul %220, %218, %cst_74 {dimension_numbers = #tpu.dot_dimension_numbers<[1], [0], [0], [1], [0, 0, 1, 1], [], []>} : vector<16x32xbf16>, vector<32x4xbf16>, vector<16x4xf32> -> vector<16x4xf32>
    %222 = vector.broadcast %219 : vector<1x4xf32> to vector<16x4xf32>
    %223 = arith.addf %221, %222 : vector<16x4xf32>
    %cst_75 = arith.constant dense<0xFF800000> : vector<16xf32>
    %224 = vector.multi_reduction <maximumf>, %223, %cst_75 [1] : vector<16x4xf32> to vector<16xf32>
    %225 = vector.shape_cast %224 : vector<16xf32> to vector<16x1xf32>
    %226 = vector.broadcast %225 : vector<16x1xf32> to vector<16x4xf32>
    %227 = arith.subf %223, %226 : vector<16x4xf32>
    %228 = math.exp %227 : vector<16x4xf32>
    %cst_76 = arith.constant dense<0.000000e+00> : vector<16xf32>
    %229 = vector.multi_reduction <add>, %228, %cst_76 [1] : vector<16x4xf32> to vector<16xf32>
    %230 = vector.shape_cast %229 : vector<16xf32> to vector<16x1xf32>
    %231 = tpu.reciprocal %230 : vector<16x1xf32> -> vector<16x1xf32>
    %232 = vector.broadcast %231 : vector<16x1xf32> to vector<16x4xf32>
    %233 = arith.mulf %228, %232 : vector<16x4xf32>
    %234 = vector.extract_strided_slice %233 {offsets = [0, 0], sizes = [1, 4], strides = [1, 1]} : vector<16x4xf32> to vector<1x4xf32>
    %c0_77 = arith.constant 0 : index
    %c0_78 = arith.constant 0 : index
    %235 = vector.load %arg3[%c0_77, %c0_78] : memref<2x4xf32, #tpu.memory_space<vmem>>, vector<1x4xf32>
    tpu.vector_store %arg3[%c0_77, %c0_78], %234 {strides = array<i32>} : memref<2x4xf32, #tpu.memory_space<vmem>>, vector<1x4xf32>,
    %236 = vector.extract_strided_slice %233 {offsets = [8, 0], sizes = [1, 4], strides = [1, 1]} : vector<16x4xf32> to vector<1x4xf32>
    %c1_79 = arith.constant 1 : index
    %c0_80 = arith.constant 0 : index
    %237 = vector.load %arg3[%c1_79, %c0_80] : memref<2x4xf32, #tpu.memory_space<vmem>>, vector<1x4xf32>
    tpu.vector_store %arg3[%c1_79, %c0_80], %236 {strides = array<i32>} : memref<2x4xf32, #tpu.memory_space<vmem>>, vector<1x4xf32>,
    return
  }
}

</mosaic_0001>

<llo_original>
// kernel: tpu_custom_call.1
$region0: #{tpu_custom_call.1}
  #allocation0 [shape = 'u32[]', space=smem, size = 0x4, offset = 0x4, fixed_abs, tag = 'smem constant byte address 0x4 - core index']
  #allocation1 [shape = 'u32[72,128]{1,0:T(1,128)}', space=vmem, size = 0x9000, scoped, tag = 'internal scratch']
  %s0 = inlined_call_operand.hbm [shape: f32[32,32], index: 0, kind: input, shape index: {}]
  %s1 = inlined_call_operand.hbm [shape: bf16[352,384], index: 1, kind: input, shape index: {}]
  %s2 = inlined_call_operand.hbm [shape: f32[17,384], index: 2, kind: input, shape index: {}]
  %s3 = inlined_call_operand.hbm [shape: f32[2,4], index: 3, kind: output, shape index: {}]
  %s4 = sld [smem:[#allocation0]]
  $region34: #{tpu_custom_call.1} parent=0
    _
  %s6 = ssub.s32 1, %s4
  %s7 = scalar_select 0, %s6, %s4
  $region1: #{tpu_custom_call.1} parent=0
    #allocation2 [shape = 'u8[16384]{0}', space=vmem, size = 0x4000, scoped, tag = 'input window, operand 0, single buffered']
    #allocation3 [shape = 's32[1]{0}', space=sflag, size = 0x4, scoped, tag = 'scoped memory for tpu_custom_call.1']
    #allocation4 [shape = 's32[1]{0}', space=sflag, size = 0x4, scoped, tag = 'scoped memory for tpu_custom_call.1']
    #allocation5 [shape = 'u8[270336]{0}', space=vmem, size = 0x42000, scoped, tag = 'input window, operand 1, single buffered']
    #allocation6 [shape = 's32[1]{0}', space=sflag, size = 0x4, scoped, tag = 'scoped memory for tpu_custom_call.1']
    #allocation7 [shape = 'u8[36864]{0}', space=vmem, size = 0x9000, scoped, tag = 'input window, operand 2, single buffered']
    #allocation8 [shape = 'u8[1024]{0}', space=vmem, size = 0x400, scoped, tag = 'output window, operand 0, single buffered']
    %8 = vsyncpa [#allocation3], 0
    %9 = vsyncpa [#allocation6], 0
    %10 = vsyncpa [#allocation4], 0
    // Predicated region
    $region2: #{tpu_custom_call.1} parent=1 // pred_check
      _
    $region3: #{tpu_custom_call.1} parent=1 // pred_check_branch
      %12 = sbr.rel (0) target = $region5
    $region4: #{tpu_custom_call.1} parent=1 // pred_region
      %14 = vsyncadd [#allocation3], 0
      %s15 = sshll.u32 %s0, 4
      %s16 = int_to_ptr.hbm [resolvable:$true] %s15
      %s17 = sshll.u32 [#allocation2], 4
      %s18 = int_to_ptr.vmem [resolvable:$true] %s17
      %23 = dma.hbm_to_vmem [thread:$0]  %s16, 512, %s18, [#allocation3], 128, 128, 8
    $region5: #{tpu_custom_call.1} parent=1 // pred_fallthru
      _
    // Predicated region
    $region6: #{tpu_custom_call.1} parent=1 // pred_check
      _
    $region7: #{tpu_custom_call.1} parent=1 // pred_check_branch
      %25 = sbr.rel (0) target = $region9
    $region8: #{tpu_custom_call.1} parent=1 // pred_region
      %27 = vsyncadd [#allocation6], 0
      %s28 = sshll.u32 %s1, 4
      %s29 = int_to_ptr.hbm [resolvable:$true] %s28
      %s30 = sshll.u32 [#allocation5], 4
      %s31 = int_to_ptr.vmem [resolvable:$true] %s30
      %36 = dma.hbm_to_vmem [thread:$0]  %s29, 8448, %s31, [#allocation6], 192, 192, 12
    $region9: #{tpu_custom_call.1} parent=1 // pred_fallthru
      _
    // Predicated region
    $region10: #{tpu_custom_call.1} parent=1 // pred_check
      _
    $region11: #{tpu_custom_call.1} parent=1 // pred_check_branch
      %38 = sbr.rel (0) target = $region13
    $region12: #{tpu_custom_call.1} parent=1 // pred_region
      %40 = vsyncadd [#allocation6], 0
      %s41 = sshll.u32 %s2, 4
      %s42 = int_to_ptr.hbm [resolvable:$true] %s41
      %s43 = sshll.u32 [#allocation7], 4
      %s44 = int_to_ptr.vmem [resolvable:$true] %s43
      %49 = dma.hbm_to_vmem [thread:$0]  %s42, 1152, %s44, [#allocation6], 384, 384, 24
    $region13: #{tpu_custom_call.1} parent=1 // pred_fallthru
      _
    // Predicated region
    $region14: #{tpu_custom_call.1} parent=1 // pred_check
      _
    $region15: #{tpu_custom_call.1} parent=1 // pred_check_branch
      %51 = sbr.rel (0) target = $region17
    $region16: #{tpu_custom_call.1} parent=1 // pred_region
      %53 = dma.done [#allocation3], 512
    $region17: #{tpu_custom_call.1} parent=1 // pred_fallthru
      _
    // Predicated region
    $region18: #{tpu_custom_call.1} parent=1 // pred_check
      _
    $region19: #{tpu_custom_call.1} parent=1 // pred_check_branch
      %55 = sbr.rel (0) target = $region21
    $region20: #{tpu_custom_call.1} parent=1 // pred_region
      %57 = dma.done [#allocation6], 8448
    $region21: #{tpu_custom_call.1} parent=1 // pred_fallthru
      _
    // Predicated region
    $region22: #{tpu_custom_call.1} parent=1 // pred_check
      _
    $region23: #{tpu_custom_call.1} parent=1 // pred_check_branch
      %59 = sbr.rel (0) target = $region25
    $region24: #{tpu_custom_call.1} parent=1 // pred_region
      %61 = dma.done [#allocation6], 1152
    $region25: #{tpu_custom_call.1} parent=1 // pred_fallthru
      _
    %v63 = vld [vmem:[#allocation2] sm:$0xff]
    %v64 = vld [vmem:[#allocation2 + $0x8] sm:$0xff]
    %v65 = vld [vmem:[#allocation2 + $0x10] sm:$0xff]
    %v66 = vld [vmem:[#allocation2 + $0x18] sm:$0xff]
    %v67 = vld [vmem:[#allocation5] sm:$0xff]
    %v68 = vld [vmem:[#allocation5 + $0x8] sm:$0xf]
    %v69 = vld [vmem:[#allocation5 + $0xc] sm:$0xff]
    %v70 = vld [vmem:[#allocation5 + $0x14] sm:$0xf]
    %v71 = vld [vmem:[#allocation5 + $0x18] sm:$0xff]
    %v72 = vld [vmem:[#allocation5 + $0x20] sm:$0xf]
    %v73 = vld [vmem:[#allocation5 + $0x24] sm:$0xff]
    %v74 = vld [vmem:[#allocation5 + $0x2c] sm:$0xf]
    %v75 = vld [vmem:[#allocation5 + $0x30] sm:$0xf]
    %v76 = vld [vmem:[#allocation5 + $0x3c] sm:$0xf]
    %v77 = vld [vmem:[#allocation5 + $0x48] sm:$0xf]
    %v78 = vld [vmem:[#allocation5 + $0x54] sm:$0xf]
    %v79 = vld [vmem:[#allocation5 + $0x60] sm:$0xf]
    %v80 = vld [vmem:[#allocation5 + $0x6c] sm:$0xf]
    %v81 = vld [vmem:[#allocation5 + $0x78] sm:$0xf]
    %v82 = vld [vmem:[#allocation5 + $0x84] sm:$0xf]
    %v83 = vld [vmem:[#allocation5 + $0x90] sm:$0xf]
    %v84 = vld [vmem:[#allocation5 + $0x9c] sm:$0xf]
    %v85 = vld [vmem:[#allocation5 + $0xa8] sm:$0xf]
    %v86 = vld [vmem:[#allocation5 + $0xb4] sm:$0xf]
    %v87 = vld [vmem:[#allocation5 + $0xc0] sm:$0xf]
    %v88 = vld [vmem:[#allocation5 + $0xcc] sm:$0xf]
    %v89 = vld [vmem:[#allocation5 + $0xd8] sm:$0xf]
    %v90 = vld [vmem:[#allocation5 + $0xe4] sm:$0xf]
    %v91 = vld [vmem:[#allocation7] ss:$8 sm:$0x7]
    %v92 = vld [vmem:[#allocation7 + $0x1] ss:$0 sm:$0xff]
    %v93 = vld [vmem:[#allocation7 + $0x2] ss:$0 sm:$0xff]
    %v94 = vld [vmem:[#allocation7 + $0x3] ss:$0 sm:$0xff]
    %v95 = vld [vmem:[#allocation7 + $0x4] ss:$0 sm:$0xff]
    %v96 = vld [vmem:[#allocation7 + $0x5] ss:$0 sm:$0xff]
    %v97 = vld [vmem:[#allocation7 + $0x6] ss:$0 sm:$0xff]
    %v98 = vld [vmem:[#allocation7 + $0x7] ss:$0 sm:$0xff]
    %v99 = vpack.c.bf16 %v64, %v63
    %v101 = vperm.slane %v91, 0
    %v102 = vperm.slane %v91, 1
    %v103 = vperm.slane %v91, 2
    %v115 = vunpack.c.l.b16 %v67
    %v116 = vunpack.c.h.b16 %v67
    %v117 = vunpack.c.l.b16 %v68
    %v118 = vunpack.c.l.b16 %v69
    %v119 = vunpack.c.h.b16 %v69
    %v120 = vunpack.c.l.b16 %v70
    %v121 = vunpack.c.l.b16 %v71
    %v122 = vunpack.c.h.b16 %v71
    %v123 = vunpack.c.l.b16 %v72
    %v124 = vunpack.c.l.b16 %v73
    %v125 = vunpack.c.h.b16 %v73
    %v126 = vunpack.c.l.b16 %v74
    %v127 = vpack.c.b16 %v118, %v115
    %v128 = vpack.c.b16 %v119, %v116
    %v129 = vpack.c.b16 %v120, %v117
    %v130 = vpack.c.b16 %v124, %v121
    %v131 = vpack.c.b16 %v125, %v122
    %v132 = vpack.c.b16 %v126, %v123
    %vm139 = vcmask 261120
    %v141 = vsel %vm139, %v99, 0
    %143 = vmatpush.bf16.msra.mxu0 0
    %144 = vmatpush.bf16.msra.mxu0 0
    %145 = vmatpush.bf16.msra.mxu0 0
    %146 = vmatpush.bf16.msra.mxu0 0
    %147 = vmatpush.bf16.msra.mxu0 0
    %148 = vmatpush.bf16.msra.mxu0 0
    %149 = vmatpush.bf16.msra.mxu0 %v130
    %150 = vmatpush.bf16.msra.mxu0 %v127
    %151 = vmatmul.bf16.gmra.mxu0 %v141
    %v152 = vpop.f32.mrf.mxu0
    %v153 = vadd.f32 %v101, %v152
    %v154 = vpop.f32.mrf.mxu0
    %v155 = vadd.f32 %v101, %v154
    %156 = vdwg.mxu0
    %157 = vmatpush.bf16.msra.mxu0 0
    %158 = vmatpush.bf16.msra.mxu0 0
    %159 = vmatpush.bf16.msra.mxu0 0
    %160 = vmatpush.bf16.msra.mxu0 0
    %161 = vmatpush.bf16.msra.mxu0 0
    %162 = vmatpush.bf16.msra.mxu0 0
    %163 = vmatpush.bf16.msra.mxu0 %v131
    %164 = vmatpush.bf16.msra.mxu0 %v128
    %165 = vmatmul.bf16.gmra.mxu0 %v141
    %v166 = vpop.f32.mrf.mxu0
    %v167 = vadd.f32 %v102, %v166
    %v168 = vpop.f32.mrf.mxu0
    %v169 = vadd.f32 %v102, %v168
    %170 = vdwg.mxu0
    %171 = vmatpush.bf16.msra.mxu0 0
    %172 = vmatpush.bf16.msra.mxu0 0
    %173 = vmatpush.bf16.msra.mxu0 0
    %174 = vmatpush.bf16.msra.mxu0 0
    %175 = vmatpush.bf16.msra.mxu0 0
    %176 = vmatpush.bf16.msra.mxu0 0
    %177 = vmatpush.bf16.msra.mxu0 %v132
    %178 = vmatpush.bf16.msra.mxu0 %v129
    %179 = vmatmul.bf16.gmra.mxu0 %v141
    %v180 = vpop.f32.mrf.mxu0
    %v181 = vadd.f32 %v103, %v180
    %v182 = vpop.f32.mrf.mxu0
    %v183 = vadd.f32 %v103, %v182
    %184 = vdwg.mxu0
    %v185 = vpack.c.bf16 %v155, %v153
    %v186 = vpack.c.bf16 %v169, %v167
    %187 = vmatpush.bf16.xpose.msra.mxu0 0
    %188 = vmatpush.bf16.xpose.msra.mxu0 0
    %189 = vmatpush.bf16.xpose.msra.mxu0 0
    %190 = vmatpush.bf16.xpose.msra.mxu0 0
    %191 = vmatpush.bf16.xpose.msra.mxu0 0
    %192 = vmatpush.bf16.xpose.msra.mxu0 0
    %193 = vmatpush.bf16.xpose.msra.mxu0 0
    %194 = vmatpush.bf16.xpose.msra.mxu0 %v186
    %195 = vmatmul.bf16.gmra.mxu0 %v185
    %v196 = vpop.f32.mrf.mxu0
    %v197 = vadd.f32 %v65, %v196
    %v198 = vpop.f32.mrf.mxu0
    %v199 = vadd.f32 %v66, %v198
    %200 = vdwg.mxu0
    %vm201 = vcmask 130048
    %v202 = vsel %vm201, %v197, -inf
    %203 = vmax.xlane.f32.xlu0 %v202
    %v204 = vpop.xlane.xlu0 %203
    %v205 = vsel %vm201, %v199, -inf
    %206 = vmax.xlane.f32.xlu0 %v205
    %v207 = vpop.xlane.xlu0 %206
    %v208 = vsub.f32 %v197, %v204
    %v209 = vsub.f32 %v199, %v207
    %v210 = vmul.f32 %v208, 1.442695
    %v211 = vpow.pop %v210
    %v212 = vmul.f32 %v209, 1.442695
    %v213 = vpow.pop %v212
    %v214 = vsel %vm201, %v211, 0.0
    %215 = vadd.xlane.f32.xlu0 %v214
    %v216 = vpop.xlane.xlu0 %215
    %v217 = vsel %vm201, %v213, 0.0
    %218 = vadd.xlane.f32.xlu0 %v217
    %v219 = vpop.xlane.xlu0 %218
    %v220 = vrcp.pop %v216
    %v221 = vrcp.pop %v219
    %v222 = vmul.f32 %v211, %v220
    %v223 = vmul.f32 %v213, %v221
    %v224 = vpack.c.bf16 %v223, %v222
    %v225 = vpack.c.bf16 %v183, %v181
    %v227 = vsel %vm201, %v224, 0
    %229 = vmatpush.bf16.msra.mxu0 0
    %230 = vmatpush.bf16.msra.mxu0 0
    %231 = vmatpush.bf16.msra.mxu0 0
    %232 = vmatpush.bf16.msra.mxu0 0
    %233 = vmatpush.bf16.msra.mxu0 0
    %234 = vmatpush.bf16.msra.mxu0 0
    %235 = vmatpush.bf16.msra.mxu0 0
    %236 = vmatpush.bf16.msra.mxu0 %v225
    %237 = vmatmul.bf16.gmra.mxu0 %v227
    %v238 = vpop.f32.mrf.mxu0
    %v239 = vadd.f32 0.0, %v238
    %v240 = vpop.f32.mrf.mxu0
    %v241 = vadd.f32 0.0, %v240
    %242 = vdwg.mxu0
    %v243 = vpack.c.bf16 %v241, %v239
    %v248 = vunpack.c.l.b16 %v75
    %v249 = vunpack.c.l.b16 %v76
    %v250 = vunpack.c.l.b16 %v77
    %v251 = vunpack.c.l.b16 %v78
    %v252 = vpack.c.b16 %v249, %v248
    %v253 = vpack.c.b16 %v251, %v250
    %v257 = vsel %vm139, %v243, 0
    %259 = vmatpush.bf16.msra.mxu0 0
    %260 = vmatpush.bf16.msra.mxu0 0
    %261 = vmatpush.bf16.msra.mxu0 0
    %262 = vmatpush.bf16.msra.mxu0 0
    %263 = vmatpush.bf16.msra.mxu0 0
    %264 = vmatpush.bf16.msra.mxu0 0
    %265 = vmatpush.bf16.msra.mxu0 %v253
    %266 = vmatpush.bf16.msra.mxu0 %v252
    %267 = vmatmul.bf16.gmra.mxu0 %v257
    %v268 = vpop.f32.mrf.mxu0
    %v269 = vadd.f32 %v92, %v268
    %v270 = vpop.f32.mrf.mxu0
    %v271 = vadd.f32 %v92, %v270
    %272 = vdwg.mxu0
    %v273 = vadd.f32 %v63, %v269
    %v274 = vadd.f32 %v64, %v271
    %v275 = vsel %vm139, %v273, 0.0
    %276 = vadd.xlane.f32.xlu0 %v275
    %v277 = vpop.xlane.xlu0 %276
    %v278 = vsel %vm139, %v274, 0.0
    %279 = vadd.xlane.f32.xlu0 %v278
    %v280 = vpop.xlane.xlu0 %279
    %v281 = vrcp.pop 32.0
    %v282 = vmul.f32 32.0, %v281
    %v283 = vsub.f32 1.0, %v282
    %v284 = vmul.f32 %v281, %v283
    %v285 = vadd.f32 %v281, %v284
    %vm286 = vweird.f32 %v281
    %v287 = vsel %vm286, %v281, %v285
    %v288 = vmul.f32 %v277, %v287
    %v289 = vmul.f32 %v280, %v287
    %v290 = vmul.f32 %v273, %v273
    %v291 = vmul.f32 %v274, %v274
    %v292 = vsel %vm139, %v290, 0.0
    %293 = vadd.xlane.f32.xlu0 %v292
    %v294 = vpop.xlane.xlu0 %293
    %v295 = vsel %vm139, %v291, 0.0
    %296 = vadd.xlane.f32.xlu0 %v295
    %v297 = vpop.xlane.xlu0 %296
    %v298 = vmul.f32 %v294, %v287
    %v299 = vmul.f32 %v297, %v287
    %v300 = vmul.f32 %v288, %v288
    %v301 = vmul.f32 %v289, %v289
    %v302 = vsub.f32 %v298, %v300
    %v303 = vsub.f32 %v299, %v301
    %v304 = vsub.f32 %v273, %v288
    %v305 = vsub.f32 %v274, %v289
    %v306 = vadd.f32 %v302, 1e-05
    %v307 = vadd.f32 %v303, 1e-05
    %v308 = vrsqrt.pop %v306
    %v309 = vmul.f32 %v308, %v306
    %v310 = vmul.f32 %v309, %v308
    %v311 = vmul.f32 0.5, %v310
    %v312 = vsub.f32 1.5, %v311
    %v313 = vmul.f32 %v308, %v312
    %vm314 = vweird.f32 %v306
    %vm315 = vweird.f32 %v308
    %vm316 = vmor %vm314, %vm315
    %v317 = vsel %vm316, %v308, %v313
    %v318 = vrsqrt.pop %v307
    %v319 = vmul.f32 %v318, %v307
    %v320 = vmul.f32 %v319, %v318
    %v321 = vmul.f32 0.5, %v320
    %v322 = vsub.f32 1.5, %v321
    %v323 = vmul.f32 %v318, %v322
    %vm324 = vweird.f32 %v307
    %vm325 = vweird.f32 %v318
    %vm326 = vmor %vm324, %vm325
    %v327 = vsel %vm326, %v318, %v323
    %v328 = vmul.f32 %v304, %v317
    %v329 = vmul.f32 %v305, %v327
    %v330 = vmul.f32 %v328, %v93
    %v331 = vmul.f32 %v329, %v93
    %v332 = vadd.f32 %v330, %v94
    %v333 = vadd.f32 %v331, %v94
    %v334 = vpack.c.bf16 %v333, %v332
    %v339 = vunpack.c.l.b16 %v79
    %v340 = vunpack.c.l.b16 %v80
    %v341 = vunpack.c.l.b16 %v81
    %v342 = vunpack.c.l.b16 %v82
    %v343 = vpack.c.b16 %v340, %v339
    %v344 = vpack.c.b16 %v342, %v341
    %v348 = vsel %vm139, %v334, 0
    %350 = vmatpush.bf16.msra.mxu0 0
    %351 = vmatpush.bf16.msra.mxu0 0
    %352 = vmatpush.bf16.msra.mxu0 0
    %353 = vmatpush.bf16.msra.mxu0 0
    %354 = vmatpush.bf16.msra.mxu0 0
    %355 = vmatpush.bf16.msra.mxu0 0
    %356 = vmatpush.bf16.msra.mxu0 %v344
    %357 = vmatpush.bf16.msra.mxu0 %v343
    %358 = vmatmul.bf16.gmra.mxu0 %v348
    %v359 = vpop.f32.mrf.mxu0
    %v360 = vadd.f32 %v95, %v359
    %v361 = vpop.f32.mrf.mxu0
    %v362 = vadd.f32 %v95, %v361
    %363 = vdwg.mxu0
    %v364 = vmul.f32 %v360, 0.5
    %v365 = vmul.f32 %v362, 0.5
    %v366 = vmul.f32 %v360, 0.044715
    %v367 = vmul.f32 %v362, 0.044715
    %v368 = vmul.f32 %v366, %v360
    %v369 = vmul.f32 %v367, %v362
    %v370 = vmul.f32 %v368, %v360
    %v371 = vmul.f32 %v369, %v362
    %v372 = vadd.f32 %v360, %v370
    %v373 = vadd.f32 %v362, %v371
    %v374 = vmul.f32 %v372, 0.7978846
    %v375 = vmul.f32 %v373, 0.7978846
    %v376 = vtanh.pop %v374
    %v377 = vtanh.pop %v375
    %v378 = vadd.f32 %v376, 1.0
    %v379 = vadd.f32 %v377, 1.0
    %v380 = vmul.f32 %v364, %v378
    %v381 = vmul.f32 %v365, %v379
    %v382 = vpack.c.bf16 %v381, %v380
    %v391 = vunpack.c.l.b16 %v83
    %v392 = vunpack.c.l.b16 %v84
    %v393 = vunpack.c.l.b16 %v85
    %v394 = vunpack.c.l.b16 %v86
    %v395 = vunpack.c.l.b16 %v87
    %v396 = vunpack.c.l.b16 %v88
    %v397 = vunpack.c.l.b16 %v89
    %v398 = vunpack.c.l.b16 %v90
    %v399 = vpack.c.b16 %v392, %v391
    %v400 = vpack.c.b16 %v394, %v393
    %v401 = vpack.c.b16 %v396, %v395
    %v402 = vpack.c.b16 %v398, %v397
    %vm407 = vcmask 523264
    %v409 = vsel %vm407, %v382, 0
    %411 = vmatpush.bf16.msra.mxu0 0
    %412 = vmatpush.bf16.msra.mxu0 0
    %413 = vmatpush.bf16.msra.mxu0 0
    %414 = vmatpush.bf16.msra.mxu0 0
    %415 = vmatpush.bf16.msra.mxu0 %v402
    %416 = vmatpush.bf16.msra.mxu0 %v401
    %417 = vmatpush.bf16.msra.mxu0 %v400
    %418 = vmatpush.bf16.msra.mxu0 %v399
    %419 = vmatmul.bf16.gmra.mxu0 %v409
    %v420 = vpop.f32.mrf.mxu0
    %v421 = vadd.f32 %v96, %v420
    %v422 = vpop.f32.mrf.mxu0
    %v423 = vadd.f32 %v96, %v422
    %424 = vdwg.mxu0
    %v425 = vadd.f32 %v332, %v421
    %v426 = vadd.f32 %v333, %v423
    %v427 = vsel %vm139, %v425, 0.0
    %428 = vadd.xlane.f32.xlu0 %v427
    %v429 = vpop.xlane.xlu0 %428
    %v430 = vsel %vm139, %v426, 0.0
    %431 = vadd.xlane.f32.xlu0 %v430
    %v432 = vpop.xlane.xlu0 %431
    %v433 = vmul.f32 %v429, %v287
    %v434 = vmul.f32 %v432, %v287
    %v435 = vmul.f32 %v425, %v425
    %v436 = vmul.f32 %v426, %v426
    %v437 = vsel %vm139, %v435, 0.0
    %438 = vadd.xlane.f32.xlu0 %v437
    %v439 = vpop.xlane.xlu0 %438
    %v440 = vsel %vm139, %v436, 0.0
    %441 = vadd.xlane.f32.xlu0 %v440
    %v442 = vpop.xlane.xlu0 %441
    %v443 = vmul.f32 %v439, %v287
    %v444 = vmul.f32 %v442, %v287
    %v445 = vmul.f32 %v433, %v433
    %v446 = vmul.f32 %v434, %v434
    %v447 = vsub.f32 %v443, %v445
    %v448 = vsub.f32 %v444, %v446
    %v449 = vsub.f32 %v425, %v433
    %v450 = vsub.f32 %v426, %v434
    %v451 = vadd.f32 %v447, 1e-05
    %v452 = vadd.f32 %v448, 1e-05
    %v453 = vrsqrt.pop %v451
    %v454 = vmul.f32 %v453, %v451
    %v455 = vmul.f32 %v454, %v453
    %v456 = vmul.f32 0.5, %v455
    %v457 = vsub.f32 1.5, %v456
    %v458 = vmul.f32 %v453, %v457
    %vm459 = vweird.f32 %v451
    %vm460 = vweird.f32 %v453
    %vm461 = vmor %vm459, %vm460
    %v462 = vsel %vm461, %v453, %v458
    %v463 = vrsqrt.pop %v452
    %v464 = vmul.f32 %v463, %v452
    %v465 = vmul.f32 %v464, %v463
    %v466 = vmul.f32 0.5, %v465
    %v467 = vsub.f32 1.5, %v466
    %v468 = vmul.f32 %v463, %v467
    %vm469 = vweird.f32 %v452
    %vm470 = vweird.f32 %v463
    %vm471 = vmor %vm469, %vm470
    %v472 = vsel %vm471, %v463, %v468
    %v473 = vmul.f32 %v449, %v462
    %v474 = vmul.f32 %v450, %v472
    %v475 = vmul.f32 %v473, %v97
    %v476 = vmul.f32 %v474, %v97
    %v477 = vadd.f32 %v475, %v98
    %v478 = vadd.f32 %v476, %v98
    %v479 = vld [vmem:[#allocation5 + $0xf0] sm:$0xff]
    %v480 = vld [vmem:[#allocation5 + $0xf8] sm:$0xf]
    %v481 = vld [vmem:[#allocation5 + $0xfc] sm:$0xff]
    %v482 = vld [vmem:[#allocation5 + $0x104] sm:$0xf]
    %v483 = vld [vmem:[#allocation5 + $0x108] sm:$0xff]
    %v484 = vld [vmem:[#allocation5 + $0x110] sm:$0xf]
    %v485 = vld [vmem:[#allocation5 + $0x114] sm:$0xff]
    %v486 = vld [vmem:[#allocation5 + $0x11c] sm:$0xf]
    %v487 = vld [vmem:[#allocation5 + $0x120] sm:$0xf]
    %v488 = vld [vmem:[#allocation5 + $0x12c] sm:$0xf]
    %v489 = vld [vmem:[#allocation5 + $0x138] sm:$0xf]
    %v490 = vld [vmem:[#allocation5 + $0x144] sm:$0xf]
    %v491 = vld [vmem:[#allocation5 + $0x150] sm:$0xf]
    %v492 = vld [vmem:[#allocation5 + $0x15c] sm:$0xf]
    %v493 = vld [vmem:[#allocation5 + $0x168] sm:$0xf]
    %v494 = vld [vmem:[#allocation5 + $0x174] sm:$0xf]
    %v495 = vld [vmem:[#allocation5 + $0x180] sm:$0xf]
    %v496 = vld [vmem:[#allocation5 + $0x18c] sm:$0xf]
    %v497 = vld [vmem:[#allocation5 + $0x198] sm:$0xf]
    %v498 = vld [vmem:[#allocation5 + $0x1a4] sm:$0xf]
    %v499 = vld [vmem:[#allocation5 + $0x1b0] sm:$0xf]
    %v500 = vld [vmem:[#allocation5 + $0x1bc] sm:$0xf]
    %v501 = vld [vmem:[#allocation5 + $0x1c8] sm:$0xf]
    %v502 = vld [vmem:[#allocation5 + $0x1d4] sm:$0xf]
    %s503 = scalar_lea.vmem [#allocation7], 24
    %v504 = vld [vmem:[%s503] ss:$8 sm:$0x7]
    %v505 = vld [vmem:[#allocation7 + $0x19] ss:$0 sm:$0xff]
    %v506 = vld [vmem:[#allocation7 + $0x1a] ss:$0 sm:$0xff]
    %v507 = vld [vmem:[#allocation7 + $0x1b] ss:$0 sm:$0xff]
    %v508 = vld [vmem:[#allocation7 + $0x1c] ss:$0 sm:$0xff]
    %v509 = vld [vmem:[#allocation7 + $0x1d] ss:$0 sm:$0xff]
    %v510 = vld [vmem:[#allocation7 + $0x1e] ss:$0 sm:$0xff]
    %v511 = vld [vmem:[#allocation7 + $0x1f] ss:$0 sm:$0xff]
    %v512 = vpack.c.bf16 %v478, %v477
    %v514 = vperm.slane %v504, 0
    %v515 = vperm.slane %v504, 1
    %v516 = vperm.slane %v504, 2
    %v528 = vunpack.c.l.b16 %v479
    %v529 = vunpack.c.h.b16 %v479
    %v530 = vunpack.c.l.b16 %v480
    %v531 = vunpack.c.l.b16 %v481
    %v532 = vunpack.c.h.b16 %v481
    %v533 = vunpack.c.l.b16 %v482
    %v534 = vunpack.c.l.b16 %v483
    %v535 = vunpack.c.h.b16 %v483
    %v536 = vunpack.c.l.b16 %v484
    %v537 = vunpack.c.l.b16 %v485
    %v538 = vunpack.c.h.b16 %v485
    %v539 = vunpack.c.l.b16 %v486
    %v540 = vpack.c.b16 %v531, %v528
    %v541 = vpack.c.b16 %v532, %v529
    %v542 = vpack.c.b16 %v533, %v530
    %v543 = vpack.c.b16 %v537, %v534
    %v544 = vpack.c.b16 %v538, %v535
    %v545 = vpack.c.b16 %v539, %v536
    %v553 = vsel %vm139, %v512, 0
    %555 = vmatpush.bf16.msra.mxu0 0
    %556 = vmatpush.bf16.msra.mxu0 0
    %557 = vmatpush.bf16.msra.mxu0 0
    %558 = vmatpush.bf16.msra.mxu0 0
    %559 = vmatpush.bf16.msra.mxu0 0
    %560 = vmatpush.bf16.msra.mxu0 0
    %561 = vmatpush.bf16.msra.mxu0 %v543
    %562 = vmatpush.bf16.msra.mxu0 %v540
    %563 = vmatmul.bf16.gmra.mxu0 %v553
    %v564 = vpop.f32.mrf.mxu0
    %v565 = vadd.f32 %v514, %v564
    %v566 = vpop.f32.mrf.mxu0
    %v567 = vadd.f32 %v514, %v566
    %568 = vdwg.mxu0
    %569 = vmatpush.bf16.msra.mxu0 0
    %570 = vmatpush.bf16.msra.mxu0 0
    %571 = vmatpush.bf16.msra.mxu0 0
    %572 = vmatpush.bf16.msra.mxu0 0
    %573 = vmatpush.bf16.msra.mxu0 0
    %574 = vmatpush.bf16.msra.mxu0 0
    %575 = vmatpush.bf16.msra.mxu0 %v544
    %576 = vmatpush.bf16.msra.mxu0 %v541
    %577 = vmatmul.bf16.gmra.mxu0 %v553
    %v578 = vpop.f32.mrf.mxu0
    %v579 = vadd.f32 %v515, %v578
    %v580 = vpop.f32.mrf.mxu0
    %v581 = vadd.f32 %v515, %v580
    %582 = vdwg.mxu0
    %583 = vmatpush.bf16.msra.mxu0 0
    %584 = vmatpush.bf16.msra.mxu0 0
    %585 = vmatpush.bf16.msra.mxu0 0
    %586 = vmatpush.bf16.msra.mxu0 0
    %587 = vmatpush.bf16.msra.mxu0 0
    %588 = vmatpush.bf16.msra.mxu0 0
    %589 = vmatpush.bf16.msra.mxu0 %v545
    %590 = vmatpush.bf16.msra.mxu0 %v542
    %591 = vmatmul.bf16.gmra.mxu0 %v553
    %v592 = vpop.f32.mrf.mxu0
    %v593 = vadd.f32 %v516, %v592
    %v594 = vpop.f32.mrf.mxu0
    %v595 = vadd.f32 %v516, %v594
    %596 = vdwg.mxu0
    %v597 = vpack.c.bf16 %v567, %v565
    %v598 = vpack.c.bf16 %v581, %v579
    %599 = vmatpush.bf16.xpose.msra.mxu0 0
    %600 = vmatpush.bf16.xpose.msra.mxu0 0
    %601 = vmatpush.bf16.xpose.msra.mxu0 0
    %602 = vmatpush.bf16.xpose.msra.mxu0 0
    %603 = vmatpush.bf16.xpose.msra.mxu0 0
    %604 = vmatpush.bf16.xpose.msra.mxu0 0
    %605 = vmatpush.bf16.xpose.msra.mxu0 0
    %606 = vmatpush.bf16.xpose.msra.mxu0 %v598
    %607 = vmatmul.bf16.gmra.mxu0 %v597
    %v608 = vpop.f32.mrf.mxu0
    %v609 = vadd.f32 %v65, %v608
    %v610 = vpop.f32.mrf.mxu0
    %v611 = vadd.f32 %v66, %v610
    %612 = vdwg.mxu0
    %v613 = vsel %vm201, %v609, -inf
    %614 = vmax.xlane.f32.xlu0 %v613
    %v615 = vpop.xlane.xlu0 %614
    %v616 = vsel %vm201, %v611, -inf
    %617 = vmax.xlane.f32.xlu0 %v616
    %v618 = vpop.xlane.xlu0 %617
    %v619 = vsub.f32 %v609, %v615
    %v620 = vsub.f32 %v611, %v618
    %v621 = vmul.f32 %v619, 1.442695
    %v622 = vpow.pop %v621
    %v623 = vmul.f32 %v620, 1.442695
    %v624 = vpow.pop %v623
    %v625 = vsel %vm201, %v622, 0.0
    %626 = vadd.xlane.f32.xlu0 %v625
    %v627 = vpop.xlane.xlu0 %626
    %v628 = vsel %vm201, %v624, 0.0
    %629 = vadd.xlane.f32.xlu0 %v628
    %v630 = vpop.xlane.xlu0 %629
    %v631 = vrcp.pop %v627
    %v632 = vrcp.pop %v630
    %v633 = vmul.f32 %v622, %v631
    %v634 = vmul.f32 %v624, %v632
    %v635 = vpack.c.bf16 %v634, %v633
    %v636 = vpack.c.bf16 %v595, %v593
    %v638 = vsel %vm201, %v635, 0
    %640 = vmatpush.bf16.msra.mxu0 0
    %641 = vmatpush.bf16.msra.mxu0 0
    %642 = vmatpush.bf16.msra.mxu0 0
    %643 = vmatpush.bf16.msra.mxu0 0
    %644 = vmatpush.bf16.msra.mxu0 0
    %645 = vmatpush.bf16.msra.mxu0 0
    %646 = vmatpush.bf16.msra.mxu0 0
    %647 = vmatpush.bf16.msra.mxu0 %v636
    %648 = vmatmul.bf16.gmra.mxu0 %v638
    %v649 = vpop.f32.mrf.mxu0
    %v650 = vadd.f32 0.0, %v649
    %v651 = vpop.f32.mrf.mxu0
    %v652 = vadd.f32 0.0, %v651
    %653 = vdwg.mxu0
    %v654 = vpack.c.bf16 %v652, %v650
    %v659 = vunpack.c.l.b16 %v487
    %v660 = vunpack.c.l.b16 %v488
    %v661 = vunpack.c.l.b16 %v489
    %v662 = vunpack.c.l.b16 %v490
    %v663 = vpack.c.b16 %v660, %v659
    %v664 = vpack.c.b16 %v662, %v661
    %v668 = vsel %vm139, %v654, 0
    %670 = vmatpush.bf16.msra.mxu0 0
    %671 = vmatpush.bf16.msra.mxu0 0
    %672 = vmatpush.bf16.msra.mxu0 0
    %673 = vmatpush.bf16.msra.mxu0 0
    %674 = vmatpush.bf16.msra.mxu0 0
    %675 = vmatpush.bf16.msra.mxu0 0
    %676 = vmatpush.bf16.msra.mxu0 %v664
    %677 = vmatpush.bf16.msra.mxu0 %v663
    %678 = vmatmul.bf16.gmra.mxu0 %v668
    %v679 = vpop.f32.mrf.mxu0
    %v680 = vadd.f32 %v505, %v679
    %v681 = vpop.f32.mrf.mxu0
    %v682 = vadd.f32 %v505, %v681
    %683 = vdwg.mxu0
    %v684 = vadd.f32 %v477, %v680
    %v685 = vadd.f32 %v478, %v682
    %v686 = vsel %vm139, %v684, 0.0
    %687 = vadd.xlane.f32.xlu0 %v686
    %v688 = vpop.xlane.xlu0 %687
    %v689 = vsel %vm139, %v685, 0.0
    %690 = vadd.xlane.f32.xlu0 %v689
    %v691 = vpop.xlane.xlu0 %690
    %v692 = vmul.f32 %v688, %v287
    %v693 = vmul.f32 %v691, %v287
    %v694 = vmul.f32 %v684, %v684
    %v695 = vmul.f32 %v685, %v685
    %v696 = vsel %vm139, %v694, 0.0
    %697 = vadd.xlane.f32.xlu0 %v696
    %v698 = vpop.xlane.xlu0 %697
    %v699 = vsel %vm139, %v695, 0.0
    %700 = vadd.xlane.f32.xlu0 %v699
    %v701 = vpop.xlane.xlu0 %700
    %v702 = vmul.f32 %v698, %v287
    %v703 = vmul.f32 %v701, %v287
    %v704 = vmul.f32 %v692, %v692
    %v705 = vmul.f32 %v693, %v693
    %v706 = vsub.f32 %v702, %v704
    %v707 = vsub.f32 %v703, %v705
    %v708 = vsub.f32 %v684, %v692
    %v709 = vsub.f32 %v685, %v693
    %v710 = vadd.f32 %v706, 1e-05
    %v711 = vadd.f32 %v707, 1e-05
    %v712 = vrsqrt.pop %v710
    %v713 = vmul.f32 %v712, %v710
    %v714 = vmul.f32 %v713, %v712
    %v715 = vmul.f32 0.5, %v714
    %v716 = vsub.f32 1.5, %v715
    %v717 = vmul.f32 %v712, %v716
    %vm718 = vweird.f32 %v710
    %vm719 = vweird.f32 %v712
    %vm720 = vmor %vm718, %vm719
    %v721 = vsel %vm720, %v712, %v717
    %v722 = vrsqrt.pop %v711
    %v723 = vmul.f32 %v722, %v711
    %v724 = vmul.f32 %v723, %v722
    %v725 = vmul.f32 0.5, %v724
    %v726 = vsub.f32 1.5, %v725
    %v727 = vmul.f32 %v722, %v726
    %vm728 = vweird.f32 %v711
    %vm729 = vweird.f32 %v722
    %vm730 = vmor %vm728, %vm729
    %v731 = vsel %vm730, %v722, %v727
    %v732 = vmul.f32 %v708, %v721
    %v733 = vmul.f32 %v709, %v731
    %v734 = vmul.f32 %v732, %v506
    %v735 = vmul.f32 %v733, %v506
    %v736 = vadd.f32 %v734, %v507
    %v737 = vadd.f32 %v735, %v507
    %v738 = vpack.c.bf16 %v737, %v736
    %v743 = vunpack.c.l.b16 %v491
    %v744 = vunpack.c.l.b16 %v492
    %v745 = vunpack.c.l.b16 %v493
    %v746 = vunpack.c.l.b16 %v494
    %v747 = vpack.c.b16 %v744, %v743
    %v748 = vpack.c.b16 %v746, %v745
    %v752 = vsel %vm139, %v738, 0
    %754 = vmatpush.bf16.msra.mxu0 0
    %755 = vmatpush.bf16.msra.mxu0 0
    %756 = vmatpush.bf16.msra.mxu0 0
    %757 = vmatpush.bf16.msra.mxu0 0
    %758 = vmatpush.bf16.msra.mxu0 0
    %759 = vmatpush.bf16.msra.mxu0 0
    %760 = vmatpush.bf16.msra.mxu0 %v748
    %761 = vmatpush.bf16.msra.mxu0 %v747
    %762 = vmatmul.bf16.gmra.mxu0 %v752
    %v763 = vpop.f32.mrf.mxu0
    %v764 = vadd.f32 %v508, %v763
    %v765 = vpop.f32.mrf.mxu0
    %v766 = vadd.f32 %v508, %v765
    %767 = vdwg.mxu0
    %v768 = vmul.f32 %v764, 0.5
    %v769 = vmul.f32 %v766, 0.5
    %v770 = vmul.f32 %v764, 0.044715
    %v771 = vmul.f32 %v766, 0.044715
    %v772 = vmul.f32 %v770, %v764
    %v773 = vmul.f32 %v771, %v766
    %v774 = vmul.f32 %v772, %v764
    %v775 = vmul.f32 %v773, %v766
    %v776 = vadd.f32 %v764, %v774
    %v777 = vadd.f32 %v766, %v775
    %v778 = vmul.f32 %v776, 0.7978846
    %v779 = vmul.f32 %v777, 0.7978846
    %v780 = vtanh.pop %v778
    %v781 = vtanh.pop %v779
    %v782 = vadd.f32 %v780, 1.0
    %v783 = vadd.f32 %v781, 1.0
    %v784 = vmul.f32 %v768, %v782
    %v785 = vmul.f32 %v769, %v783
    %v786 = vpack.c.bf16 %v785, %v784
    %v795 = vunpack.c.l.b16 %v495
    %v796 = vunpack.c.l.b16 %v496
    %v797 = vunpack.c.l.b16 %v497
    %v798 = vunpack.c.l.b16 %v498
    %v799 = vunpack.c.l.b16 %v499
    %v800 = vunpack.c.l.b16 %v500
    %v801 = vunpack.c.l.b16 %v501
    %v802 = vunpack.c.l.b16 %v502
    %v803 = vpack.c.b16 %v796, %v795
    %v804 = vpack.c.b16 %v798, %v797
    %v805 = vpack.c.b16 %v800, %v799
    %v806 = vpack.c.b16 %v802, %v801
    %v812 = vsel %vm407, %v786, 0
    %814 = vmatpush.bf16.msra.mxu0 0
    %815 = vmatpush.bf16.msra.mxu0 0
    %816 = vmatpush.bf16.msra.mxu0 0
    %817 = vmatpush.bf16.msra.mxu0 0
    %818 = vmatpush.bf16.msra.mxu0 %v806
    %819 = vmatpush.bf16.msra.mxu0 %v805
    %820 = vmatpush.bf16.msra.mxu0 %v804
    %821 = vmatpush.bf16.msra.mxu0 %v803
    %822 = vmatmul.bf16.gmra.mxu0 %v812
    %v823 = vpop.f32.mrf.mxu0
    %v824 = vadd.f32 %v509, %v823
    %v825 = vpop.f32.mrf.mxu0
    %v826 = vadd.f32 %v509, %v825
    %827 = vdwg.mxu0
    %v828 = vadd.f32 %v736, %v824
    %v829 = vadd.f32 %v737, %v826
    %v830 = vsel %vm139, %v828, 0.0
    %831 = vadd.xlane.f32.xlu0 %v830
    %v832 = vpop.xlane.xlu0 %831
    %v833 = vsel %vm139, %v829, 0.0
    %834 = vadd.xlane.f32.xlu0 %v833
    %v835 = vpop.xlane.xlu0 %834
    %v836 = vmul.f32 %v832, %v287
    %v837 = vmul.f32 %v835, %v287
    %v838 = vmul.f32 %v828, %v828
    %v839 = vmul.f32 %v829, %v829
    %v840 = vsel %vm139, %v838, 0.0
    %841 = vadd.xlane.f32.xlu0 %v840
    %v842 = vpop.xlane.xlu0 %841
    %v843 = vsel %vm139, %v839, 0.0
    %844 = vadd.xlane.f32.xlu0 %v843
    %v845 = vpop.xlane.xlu0 %844
    %v846 = vmul.f32 %v842, %v287
    %v847 = vmul.f32 %v845, %v287
    %v848 = vmul.f32 %v836, %v836
    %v849 = vmul.f32 %v837, %v837
    %v850 = vsub.f32 %v846, %v848
    %v851 = vsub.f32 %v847, %v849
    %v852 = vsub.f32 %v828, %v836
    %v853 = vsub.f32 %v829, %v837
    %v854 = vadd.f32 %v850, 1e-05
    %v855 = vadd.f32 %v851, 1e-05
    %v856 = vrsqrt.pop %v854
    %v857 = vmul.f32 %v856, %v854
    %v858 = vmul.f32 %v857, %v856
    %v859 = vmul.f32 0.5, %v858
    %v860 = vsub.f32 1.5, %v859
    %v861 = vmul.f32 %v856, %v860
    %vm862 = vweird.f32 %v854
    %vm863 = vweird.f32 %v856
    %vm864 = vmor %vm862, %vm863
    %v865 = vsel %vm864, %v856, %v861
    %v866 = vrsqrt.pop %v855
    %v867 = vmul.f32 %v866, %v855
    %v868 = vmul.f32 %v867, %v866
    %v869 = vmul.f32 0.5, %v868
    %v870 = vsub.f32 1.5, %v869
    %v871 = vmul.f32 %v866, %v870
    %vm872 = vweird.f32 %v855
    %vm873 = vweird.f32 %v866
    %vm874 = vmor %vm872, %vm873
    %v875 = vsel %vm874, %v866, %v871
    %v876 = vmul.f32 %v852, %v865
    %v877 = vmul.f32 %v853, %v875
    %v878 = vmul.f32 %v876, %v510
    %v879 = vmul.f32 %v877, %v510
    %v880 = vadd.f32 %v878, %v511
    %v881 = vadd.f32 %v879, %v511
    %v882 = vld [vmem:[#allocation5 + $0x1e0] sm:$0xf]
    %v883 = vld [vmem:[#allocation5 + $0x1ec] sm:$0xf]
    %v884 = vld [vmem:[#allocation5 + $0x1f8] sm:$0xf]
    %v885 = vld [vmem:[#allocation5 + $0x204] sm:$0xf]
    %v886 = vld [vmem:[#allocation7 + $0x30] ss:$0 sm:$0xff]
    %v887 = vpack.c.bf16 %v881, %v880
    %v892 = vunpack.c.l.b16 %v882
    %v893 = vunpack.c.l.b16 %v883
    %v894 = vunpack.c.l.b16 %v884
    %v895 = vunpack.c.l.b16 %v885
    %v896 = vpack.c.b16 %v893, %v892
    %v897 = vpack.c.b16 %v895, %v894
    %v901 = vsel %vm139, %v887, 0
    %903 = vmatpush.bf16.msra.mxu0 0
    %904 = vmatpush.bf16.msra.mxu0 0
    %905 = vmatpush.bf16.msra.mxu0 0
    %906 = vmatpush.bf16.msra.mxu0 0
    %907 = vmatpush.bf16.msra.mxu0 0
    %908 = vmatpush.bf16.msra.mxu0 0
    %909 = vmatpush.bf16.msra.mxu0 %v897
    %910 = vmatpush.bf16.msra.mxu0 %v896
    %911 = vmatmul.bf16.gmra.mxu0 %v901
    %v912 = vpop.f32.mrf.mxu0
    %v913 = vadd.f32 %v886, %v912
    %v914 = vpop.f32.mrf.mxu0
    %v915 = vadd.f32 %v886, %v914
    %916 = vdwg.mxu0
    %vm917 = vcmask 31744
    %v918 = vsel %vm917, %v913, -inf
    %919 = vmax.xlane.f32.xlu0 %v918
    %v920 = vpop.xlane.xlu0 %919
    %v921 = vsel %vm917, %v915, -inf
    %922 = vmax.xlane.f32.xlu0 %v921
    %v923 = vpop.xlane.xlu0 %922
    %v924 = vsub.f32 %v913, %v920
    %v925 = vsub.f32 %v915, %v923
    %v926 = vmul.f32 %v924, 1.442695
    %v927 = vpow.pop %v926
    %v928 = vmul.f32 %v925, 1.442695
    %v929 = vpow.pop %v928
    %v930 = vsel %vm917, %v927, 0.0
    %931 = vadd.xlane.f32.xlu0 %v930
    %v932 = vpop.xlane.xlu0 %931
    %v933 = vsel %vm917, %v929, 0.0
    %934 = vadd.xlane.f32.xlu0 %v933
    %v935 = vpop.xlane.xlu0 %934
    %v936 = vrcp.pop %v932
    %v937 = vmul.f32 %v932, %v936
    %v938 = vsub.f32 1.0, %v937
    %v939 = vmul.f32 %v936, %v938
    %v940 = vadd.f32 %v936, %v939
    %vm941 = vweird.f32 %v932
    %vm942 = vweird.f32 %v936
    %vm943 = vmor %vm941, %vm942
    %v944 = vsel %vm943, %v936, %v940
    %v945 = vand.u32 2147483647, %v932
    %vm946 = vcmp.eq.f32.partialorder %v945, 8.507059e+37
    %v947 = vand.u32 %v932, 2147483648
    %v948 = vor.u32 1.1754944e-38, %v947
    %v949 = vsel %vm946, %v948, %v944
    %v950 = vrcp.pop %v935
    %v951 = vmul.f32 %v935, %v950
    %v952 = vsub.f32 1.0, %v951
    %v953 = vmul.f32 %v950, %v952
    %v954 = vadd.f32 %v950, %v953
    %vm955 = vweird.f32 %v935
    %vm956 = vweird.f32 %v950
    %vm957 = vmor %vm955, %vm956
    %v958 = vsel %vm957, %v950, %v954
    %v959 = vand.u32 2147483647, %v935
    %vm960 = vcmp.eq.f32.partialorder %v959, 8.507059e+37
    %v961 = vand.u32 %v935, 2147483648
    %v962 = vor.u32 1.1754944e-38, %v961
    %v963 = vsel %vm960, %v962, %v958
    %v964 = vmul.f32 %v927, %v949
    %v965 = vmul.f32 %v929, %v963
    %vm966 = vcmask 24576
    %967 = vst.msk [vmem:[#allocation8] sm:$0x1] %vm966, %v964
    %968 = vst.msk [vmem:[#allocation8 + $0x1] sm:$0x1] %vm966, %v965
    // Predicated region
    $region26: #{tpu_custom_call.1} parent=1 // pred_check
      _
    $region27: #{tpu_custom_call.1} parent=1 // pred_check_branch
      %970 = sbr.rel (0) target = $region29
    $region28: #{tpu_custom_call.1} parent=1 // pred_region
      %972 = vsyncadd [#allocation4], 0
      %s974 = sshll.u32 [#allocation8], 4
      %s975 = int_to_ptr.vmem [resolvable:$true] %s974
      %s976 = sshll.u32 %s3, 4
      %s977 = int_to_ptr.hbm [resolvable:$true] %s976
      %979 = dma.vmem_to_hbm [thread:$0]  %s975, 32, %s977, [#allocation4]
    $region29: #{tpu_custom_call.1} parent=1 // pred_fallthru
      _
    // Predicated region
    $region30: #{tpu_custom_call.1} parent=1 // pred_check
      _
    $region31: #{tpu_custom_call.1} parent=1 // pred_check_branch
      %981 = sbr.rel (0) target = $region33
    $region32: #{tpu_custom_call.1} parent=1 // pred_region
      %983 = dma.done [#allocation4], 32
    $region33: #{tpu_custom_call.1} parent=1 // pred_fallthru
      _
    %984 = vsyncpa [#allocation3], 1
    %985 = vsyncpa [#allocation6], 1
    %986 = vsyncpa [#allocation4], 1

</llo_original>
